<compile_context>
chip_gen: v7x
topology: tpu7x:2x2x1
jax: 0.10.0
libtpu: 0.0.40
codegen_flags: <defaults>
</compile_context>

<pallas_src>
import jax
import jax.numpy as jnp
from jax import lax
from jax.experimental import pallas as pl
from jax.experimental.pallas import tpu as pltpu


def concat_block(x_nchw, w_oihw, b):
    """Forward of ConcatBlock(sub=Conv2d(C, C, 3, padding=1) + ReLU).

    x_nchw : (N, C, H, W) float32
    w_oihw : (Cout, C, 3, 3) float32   (PyTorch Conv2d weight layout)
    b      : (Cout,)        float32
    returns (N, C + Cout, H, W) float32
    """
    N, C, H, W = x_nchw.shape
    Cout = w_oihw.shape[0]
    HW = H * W
    NC = N * C
    NCo = N * Cout
    K = 9 * NC + 1                       # 9 taps x (N*C) rows + 1 ones row for the bias

    # ---- wrapper: FREE reshape of activations; only the tiny weights get repacked ----
    x2d = x_nchw.reshape(NC, HW)

    # (Cout, Cin, 3, 3) -> per-tap (9, Cout, Cin), then block-diagonal over the batch so
    # a single GEMM handles every image:
    #   wb[n*Cout + o, t*NC + n*C + ci] = w[o, ci, ky, kx],  t = ky*3 + kx
    # Last column carries the bias (it multiplies the in-kernel ones row).
    w_taps = jnp.transpose(w_oihw, (2, 3, 0, 1)).reshape(9, Cout, C)
    eye_n = jnp.eye(N, dtype=w_oihw.dtype)
    blocks = [jnp.kron(eye_n, w_taps[t]) for t in range(9)]          # 9 x (NCo, NC)
    bias_col = jnp.tile(b, N)[:, None]                               # (NCo, 1)
    wb = jnp.concatenate(blocks + [bias_col], axis=1).astype(jnp.bfloat16)   # (NCo, K)

    def kernel(x_ref, wb_ref, o_ref):
        x = x_ref[...]                                               # (NC, HW) f32, exact

        # Lane-position masks (zero padding at the image borders), computed from iota.
        lane = lax.broadcasted_iota(jnp.int32, (1, HW), 1)
        if (W & (W - 1)) == 0:                                       # power-of-two fast path
            col = lane & (W - 1)
        else:
            col = lane % W

        # im2col: nine lane-rolls (XLU) of the same flat block + boundary masking.
        # Each segment is NC (=8 here) sublane rows -> vreg-row-group aligned concat.
        segs = []
        for dy in (-1, 0, 1):
            for dx in (-1, 0, 1):
                off = dy * W + dx
                s = pltpu.roll(x, shift=(-off) % HW, axis=1) if off else x
                conds = []
                if dy < 0:
                    conds.append(lane >= W)                          # h - 1 >= 0
                if dy > 0:
                    conds.append(lane < (H - 1) * W)                 # h + 1 <= H-1
                if dx < 0:
                    conds.append(col >= 1)                           # w - 1 >= 0
                if dx > 0:
                    conds.append(col <= W - 2)                       # w + 1 <= W-1
                if conds:
                    valid = conds[0]
                    for c in conds[1:]:
                        valid = jnp.logical_and(valid, c)
                    s = jnp.where(valid, s, jnp.zeros_like(s))
                segs.append(s.astype(jnp.bfloat16))
        segs.append(jnp.ones((1, HW), dtype=jnp.bfloat16))           # bias row
        patches = jnp.concatenate(segs, axis=0)                      # (K, HW) bf16

        # One bf16 GEMM (f32 accumulation) for all N images; bias comes out of the MXU.
        acc = jnp.dot(wb_ref[...], patches, preferred_element_type=jnp.float32)
        conv = jnp.maximum(acc, 0.0).astype(o_ref.dtype)             # (NCo, HW)

        # Channel concat: interleave exact-f32 passthrough rows with conv rows per image
        # and write the whole (N*(C+Cout), HW) output with a single dense store.
        rows = []
        for n in range(N):
            rows.append(x[n * C:(n + 1) * C])
            rows.append(conv[n * Cout:(n + 1) * Cout])
        o_ref[...] = jnp.concatenate(rows, axis=0)

    out2d = pl.pallas_call(
        kernel,
        out_shape=jax.ShapeDtypeStruct((N * (C + Cout), HW), x_nchw.dtype),
        grid_spec=pltpu.PrefetchScalarGridSpec(
            num_scalar_prefetch=0,
            grid=(1,),
            in_specs=[
                pl.BlockSpec((NC, HW), lambda i: (0, 0)),
                pl.BlockSpec((NCo, K), lambda i: (0, 0)),
            ],
            out_specs=pl.BlockSpec((N * (C + Cout), HW), lambda i: (0, 0)),
        ),
        compiler_params=pltpu.CompilerParams(
            dimension_semantics=("arbitrary",)),
    )(x2d, wb)

    # Free reshape back to NCHW — no strided slice, no transpose.
    return out2d.reshape(N, C + Cout, H, W)


def _reference(x_nchw, w_oihw, b):
    """Plain-JAX reference: concat(x, relu(conv2d(x, w) + b)) in NCHW."""
    conv = jax.lax.conv_general_dilated(
        x_nchw, w_oihw, window_strides=(1, 1), padding="SAME",
        dimension_numbers=("NCHW", "OIHW", "NCHW"),
        precision=jax.lax.Precision.HIGHEST)
    conv = jnp.maximum(conv + b.reshape(1, -1, 1, 1), 0.0)
    return jnp.concatenate([x_nchw, conv], axis=1)


if __name__ == "__main__":
    key = jax.random.PRNGKey(0)
    kx, kw, kb = jax.random.split(key, 3)

    N, C, H, W = 2, 4, 16, 16
    x = jax.random.normal(kx, (N, C, H, W), dtype=jnp.float32)
    # deterministic synthetic Conv2d(C, C, 3, padding=1) parameters (the "submodule")
    w = jax.random.normal(kw, (C, C, 3, 3), dtype=jnp.float32) * 0.1
    b = jax.random.normal(kb, (C,), dtype=jnp.float32) * 0.1

    out = jax.block_until_ready(concat_block(x, w, b))

    ref = _reference(x, w, b)
    assert out.shape == (N, 2 * C, H, W), out.shape
    assert jnp.allclose(out, ref, rtol=1e-2, atol=1e-2), "mismatch vs reference"
    # The passthrough half of the concat must be bit-exact (it bypasses the MXU).
    assert bool((out[:, :C] == x).all()), "passthrough half not exact"

    print("KERNEL_OK")
</pallas_src>

<mosaic_0001>
module attributes {stable_mosaic.version = 11 : i64} {
  func.func @kernel(%arg0: i32, %arg1: memref<8x256xf32, #tpu.memory_space<vmem>>, %arg2: memref<8x73xbf16, #tpu.memory_space<vmem>>, %arg3: memref<16x256xf32, #tpu.memory_space<vmem>>) attributes {dimension_semantics = [#tpu.dimension_semantics<arbitrary>], iteration_bounds = array<i64: 1>, scalar_prefetch = 0 : i64, scratch_operands = 0 : i64, tpu.core_type = #tpu.core_type<tc>, window_params = [{pipeline_mode = #tpu.pipeline_mode<synchronous>, transform_indices = @transform_0, window_bounds = array<i64: 8, 256>}, {pipeline_mode = #tpu.pipeline_mode<synchronous>, transform_indices = @transform_1, window_bounds = array<i64: 8, 73>}, {pipeline_mode = #tpu.pipeline_mode<synchronous>, transform_indices = @transform_2, window_bounds = array<i64: 16, 256>}]} {
    %c0 = arith.constant 0 : index
    %c0_0 = arith.constant 0 : index
    %0 = vector.load %arg1[%c0, %c0_0] : memref<8x256xf32, #tpu.memory_space<vmem>>, vector<8x256xf32>
    %1 = tpu.iota {dimensions = array<i32: 1>} : vector<1x256xi32>
    %c15_i32 = arith.constant 15 : i32
    %2 = vector.broadcast %c15_i32 : i32 to vector<1x256xi32>
    %3 = arith.andi %1, %2 : vector<1x256xi32>
    %c17_i32 = arith.constant 17 : i32
    %4 = tpu.dynamic_rotate %0 by %c17_i32 dim 1 : vector<8x256xf32>, i32 -> vector<8x256xf32>
    %c16_i32 = arith.constant 16 : i32
    %5 = vector.broadcast %c16_i32 : i32 to vector<1x256xi32>
    %6 = arith.cmpi sge, %1, %5 : vector<1x256xi32>
    %c1_i32 = arith.constant 1 : i32
    %7 = vector.broadcast %c1_i32 : i32 to vector<1x256xi32>
    %8 = arith.cmpi sge, %3, %7 : vector<1x256xi32>
    %9 = arith.andi %6, %8 : vector<1x256xi1>
    %cst = arith.constant 0.000000e+00 : f32
    %10 = vector.broadcast %cst : f32 to vector<8x256xf32>
    %11 = vector.shape_cast %9 : vector<1x256xi1> to vector<1x256xi1>
    %12 = vector.broadcast %11 : vector<1x256xi1> to vector<8x256xi1>
    %13 = arith.select %12, %4, %10 : vector<8x256xi1>, vector<8x256xf32>
    %14 = arith.truncf %13 : vector<8x256xf32> to vector<8x256xbf16>
    %c16_i32_1 = arith.constant 16 : i32
    %15 = tpu.dynamic_rotate %0 by %c16_i32_1 dim 1 : vector<8x256xf32>, i32 -> vector<8x256xf32>
    %c16_i32_2 = arith.constant 16 : i32
    %16 = vector.broadcast %c16_i32_2 : i32 to vector<1x256xi32>
    %17 = arith.cmpi sge, %1, %16 : vector<1x256xi32>
    %cst_3 = arith.constant 0.000000e+00 : f32
    %18 = vector.broadcast %cst_3 : f32 to vector<8x256xf32>
    %19 = vector.shape_cast %17 : vector<1x256xi1> to vector<1x256xi1>
    %20 = vector.broadcast %19 : vector<1x256xi1> to vector<8x256xi1>
    %21 = arith.select %20, %15, %18 : vector<8x256xi1>, vector<8x256xf32>
    %22 = arith.truncf %21 : vector<8x256xf32> to vector<8x256xbf16>
    %c15_i32_4 = arith.constant 15 : i32
    %23 = tpu.dynamic_rotate %0 by %c15_i32_4 dim 1 : vector<8x256xf32>, i32 -> vector<8x256xf32>
    %c16_i32_5 = arith.constant 16 : i32
    %24 = vector.broadcast %c16_i32_5 : i32 to vector<1x256xi32>
    %25 = arith.cmpi sge, %1, %24 : vector<1x256xi32>
    %c14_i32 = arith.constant 14 : i32
    %26 = vector.broadcast %c14_i32 : i32 to vector<1x256xi32>
    %27 = arith.cmpi sle, %3, %26 : vector<1x256xi32>
    %28 = arith.andi %25, %27 : vector<1x256xi1>
    %cst_6 = arith.constant 0.000000e+00 : f32
    %29 = vector.broadcast %cst_6 : f32 to vector<8x256xf32>
    %30 = vector.shape_cast %28 : vector<1x256xi1> to vector<1x256xi1>
    %31 = vector.broadcast %30 : vector<1x256xi1> to vector<8x256xi1>
    %32 = arith.select %31, %23, %29 : vector<8x256xi1>, vector<8x256xf32>
    %33 = arith.truncf %32 : vector<8x256xf32> to vector<8x256xbf16>
    %c1_i32_7 = arith.constant 1 : i32
    %34 = tpu.dynamic_rotate %0 by %c1_i32_7 dim 1 : vector<8x256xf32>, i32 -> vector<8x256xf32>
    %c1_i32_8 = arith.constant 1 : i32
    %35 = vector.broadcast %c1_i32_8 : i32 to vector<1x256xi32>
    %36 = arith.cmpi sge, %3, %35 : vector<1x256xi32>
    %cst_9 = arith.constant 0.000000e+00 : f32
    %37 = vector.broadcast %cst_9 : f32 to vector<8x256xf32>
    %38 = vector.shape_cast %36 : vector<1x256xi1> to vector<1x256xi1>
    %39 = vector.broadcast %38 : vector<1x256xi1> to vector<8x256xi1>
    %40 = arith.select %39, %34, %37 : vector<8x256xi1>, vector<8x256xf32>
    %41 = arith.truncf %40 : vector<8x256xf32> to vector<8x256xbf16>
    %42 = arith.truncf %0 : vector<8x256xf32> to vector<8x256xbf16>
    %c255_i32 = arith.constant 255 : i32
    %43 = tpu.dynamic_rotate %0 by %c255_i32 dim 1 : vector<8x256xf32>, i32 -> vector<8x256xf32>
    %c14_i32_10 = arith.constant 14 : i32
    %44 = vector.broadcast %c14_i32_10 : i32 to vector<1x256xi32>
    %45 = arith.cmpi sle, %3, %44 : vector<1x256xi32>
    %cst_11 = arith.constant 0.000000e+00 : f32
    %46 = vector.broadcast %cst_11 : f32 to vector<8x256xf32>
    %47 = vector.shape_cast %45 : vector<1x256xi1> to vector<1x256xi1>
    %48 = vector.broadcast %47 : vector<1x256xi1> to vector<8x256xi1>
    %49 = arith.select %48, %43, %46 : vector<8x256xi1>, vector<8x256xf32>
    %50 = arith.truncf %49 : vector<8x256xf32> to vector<8x256xbf16>
    %c241_i32 = arith.constant 241 : i32
    %51 = tpu.dynamic_rotate %0 by %c241_i32 dim 1 : vector<8x256xf32>, i32 -> vector<8x256xf32>
    %c240_i32 = arith.constant 240 : i32
    %52 = vector.broadcast %c240_i32 : i32 to vector<1x256xi32>
    %53 = arith.cmpi slt, %1, %52 : vector<1x256xi32>
    %c1_i32_12 = arith.constant 1 : i32
    %54 = vector.broadcast %c1_i32_12 : i32 to vector<1x256xi32>
    %55 = arith.cmpi sge, %3, %54 : vector<1x256xi32>
    %56 = arith.andi %53, %55 : vector<1x256xi1>
    %cst_13 = arith.constant 0.000000e+00 : f32
    %57 = vector.broadcast %cst_13 : f32 to vector<8x256xf32>
    %58 = vector.shape_cast %56 : vector<1x256xi1> to vector<1x256xi1>
    %59 = vector.broadcast %58 : vector<1x256xi1> to vector<8x256xi1>
    %60 = arith.select %59, %51, %57 : vector<8x256xi1>, vector<8x256xf32>
    %61 = arith.truncf %60 : vector<8x256xf32> to vector<8x256xbf16>
    %c240_i32_14 = arith.constant 240 : i32
    %62 = tpu.dynamic_rotate %0 by %c240_i32_14 dim 1 : vector<8x256xf32>, i32 -> vector<8x256xf32>
    %c240_i32_15 = arith.constant 240 : i32
    %63 = vector.broadcast %c240_i32_15 : i32 to vector<1x256xi32>
    %64 = arith.cmpi slt, %1, %63 : vector<1x256xi32>
    %cst_16 = arith.constant 0.000000e+00 : f32
    %65 = vector.broadcast %cst_16 : f32 to vector<8x256xf32>
    %66 = vector.shape_cast %64 : vector<1x256xi1> to vector<1x256xi1>
    %67 = vector.broadcast %66 : vector<1x256xi1> to vector<8x256xi1>
    %68 = arith.select %67, %62, %65 : vector<8x256xi1>, vector<8x256xf32>
    %69 = arith.truncf %68 : vector<8x256xf32> to vector<8x256xbf16>
    %c239_i32 = arith.constant 239 : i32
    %70 = tpu.dynamic_rotate %0 by %c239_i32 dim 1 : vector<8x256xf32>, i32 -> vector<8x256xf32>
    %c240_i32_17 = arith.constant 240 : i32
    %71 = vector.broadcast %c240_i32_17 : i32 to vector<1x256xi32>
    %72 = arith.cmpi slt, %1, %71 : vector<1x256xi32>
    %c14_i32_18 = arith.constant 14 : i32
    %73 = vector.broadcast %c14_i32_18 : i32 to vector<1x256xi32>
    %74 = arith.cmpi sle, %3, %73 : vector<1x256xi32>
    %75 = arith.andi %72, %74 : vector<1x256xi1>
    %cst_19 = arith.constant 0.000000e+00 : f32
    %76 = vector.broadcast %cst_19 : f32 to vector<8x256xf32>
    %77 = vector.shape_cast %75 : vector<1x256xi1> to vector<1x256xi1>
    %78 = vector.broadcast %77 : vector<1x256xi1> to vector<8x256xi1>
    %79 = arith.select %78, %70, %76 : vector<8x256xi1>, vector<8x256xf32>
    %80 = arith.truncf %79 : vector<8x256xf32> to vector<8x256xbf16>
    %cst_20 = arith.constant 1.000000e+00 : bf16
    %81 = vector.broadcast %cst_20 : bf16 to vector<1x256xbf16>
    %82 = tpu.concatenate %14, %22, %33, %41, %42, %50, %61, %69, %80, %81 in 0 : vector<8x256xbf16>, vector<8x256xbf16>, vector<8x256xbf16>, vector<8x256xbf16>, vector<8x256xbf16>, vector<8x256xbf16>, vector<8x256xbf16>, vector<8x256xbf16>, vector<8x256xbf16>, vector<1x256xbf16> -> vector<73x256xbf16>
    %c0_21 = arith.constant 0 : index
    %c0_22 = arith.constant 0 : index
    %83 = vector.load %arg2[%c0_21, %c0_22] : memref<8x73xbf16, #tpu.memory_space<vmem>>, vector<8x73xbf16>
    %cst_23 = arith.constant dense<0.000000e+00> : vector<8x256xf32>
    %84 = tpu.matmul %83, %82, %cst_23 {dimension_numbers = #tpu.dot_dimension_numbers<[1], [0], [0], [1], [0, 0, 1, 1], [], []>} : vector<8x73xbf16>, vector<73x256xbf16>, vector<8x256xf32> -> vector<8x256xf32>
    %cst_24 = arith.constant 0.000000e+00 : f32
    %85 = vector.broadcast %cst_24 : f32 to vector<8x256xf32>
    %86 = arith.maximumf %84, %85 : vector<8x256xf32>
    %87 = vector.extract_strided_slice %0 {offsets = [0, 0], sizes = [4, 256], strides = [1, 1]} : vector<8x256xf32> to vector<4x256xf32>
    %88 = vector.extract_strided_slice %86 {offsets = [0, 0], sizes = [4, 256], strides = [1, 1]} : vector<8x256xf32> to vector<4x256xf32>
    %89 = vector.extract_strided_slice %0 {offsets = [4, 0], sizes = [4, 256], strides = [1, 1]} : vector<8x256xf32> to vector<4x256xf32>
    %90 = vector.extract_strided_slice %86 {offsets = [4, 0], sizes = [4, 256], strides = [1, 1]} : vector<8x256xf32> to vector<4x256xf32>
    %91 = tpu.concatenate %87, %88, %89, %90 in 0 : vector<4x256xf32>, vector<4x256xf32>, vector<4x256xf32>, vector<4x256xf32> -> vector<16x256xf32>
    %c0_25 = arith.constant 0 : index
    %c0_26 = arith.constant 0 : index
    %92 = vector.load %arg3[%c0_25, %c0_26] : memref<16x256xf32, #tpu.memory_space<vmem>>, vector<16x256xf32>
    tpu.vector_store %arg3[%c0_25, %c0_26], %91 {strides = array<i32>} : memref<16x256xf32, #tpu.memory_space<vmem>>, vector<16x256xf32>,
    return
  }
  func.func @transform_0(%arg0: i32) -> (i32, i32) {
    %c0_i32 = arith.constant 0 : i32
    %c0_i32_0 = arith.constant 0 : i32
    %c0_i32_1 = arith.constant 0 : i32
    return %c0_i32, %c0_i32_0 : i32, i32
  }
  func.func @transform_1(%arg0: i32) -> (i32, i32) {
    %c0_i32 = arith.constant 0 : i32
    %c0_i32_0 = arith.constant 0 : i32
    %c0_i32_1 = arith.constant 0 : i32
    return %c0_i32, %c0_i32_0 : i32, i32
  }
  func.func @transform_2(%arg0: i32) -> (i32, i32) {
    %c0_i32 = arith.constant 0 : i32
    %c0_i32_0 = arith.constant 0 : i32
    %c0_i32_1 = arith.constant 0 : i32
    return %c0_i32, %c0_i32_0 : i32, i32
  }
}

</mosaic_0001>

<llo_original>
// kernel: tpu_custom_call.1
$region0: #{tpu_custom_call.1}
  #allocation0 [shape = 'u32[]', space=smem, size = 0x4, offset = 0x4, fixed_abs, tag = 'smem constant byte address 0x4 - core index']
  #allocation1 [shape = 'u32[144,128]{1,0:T(1,128)}', space=vmem, size = 0x12000, scoped, tag = 'internal scratch']
  %s0 = inlined_call_operand.hbm [shape: f32[8,256], index: 0, kind: input, shape index: {}]
  %s1 = inlined_call_operand.hbm [shape: bf16[8,73], index: 1, kind: input, shape index: {}]
  %s2 = inlined_call_operand.hbm [shape: f32[16,256], index: 2, kind: output, shape index: {}]
  %s3 = sld [smem:[#allocation0]]
  $region26: #{tpu_custom_call.1} parent=0
    _
  %s5 = ssub.s32 1, %s3
  %s6 = scalar_select 0, %s5, %s3
  $region1: #{tpu_custom_call.1} parent=0
    #allocation2 [shape = 'u8[8192]{0}', space=vmem, size = 0x2000, scoped, tag = 'input window, operand 0, single buffered']
    #allocation3 [shape = 's32[1]{0}', space=sflag, size = 0x4, scoped, tag = 'scoped memory for tpu_custom_call.1']
    #allocation4 [shape = 's32[1]{0}', space=sflag, size = 0x4, scoped, tag = 'scoped memory for tpu_custom_call.1']
    #allocation5 [shape = 'u8[2048]{0}', space=vmem, size = 0x800, scoped, tag = 'input window, operand 1, single buffered']
    #allocation6 [shape = 's32[1]{0}', space=sflag, size = 0x4, scoped, tag = 'scoped memory for tpu_custom_call.1']
    #allocation7 [shape = 'u8[16384]{0}', space=vmem, size = 0x4000, scoped, tag = 'output window, operand 0, single buffered']
    %7 = vsyncpa [#allocation3], 0
    %8 = vsyncpa [#allocation6], 0
    %9 = vsyncpa [#allocation4], 0
    // Predicated region
    $region2: #{tpu_custom_call.1} parent=1 // pred_check
      _
    $region3: #{tpu_custom_call.1} parent=1 // pred_check_branch
      %11 = sbr.rel (0) target = $region5
    $region4: #{tpu_custom_call.1} parent=1 // pred_region
      %s13 = ssub.s32 256, 256
      %14 = vsyncadd [#allocation3], %s13
      %s16 = sshll.u32 [#allocation2], 4
      %s17 = int_to_ptr.vmem [resolvable:$true] %s16
      %19 = dma.hbm_to_vmem [thread:$0]  %s0, 256, %s17, [#allocation3]
    $region5: #{tpu_custom_call.1} parent=1 // pred_fallthru
      _
    // Predicated region
    $region6: #{tpu_custom_call.1} parent=1 // pred_check
      _
    $region7: #{tpu_custom_call.1} parent=1 // pred_check_branch
      %21 = sbr.rel (0) target = $region9
    $region8: #{tpu_custom_call.1} parent=1 // pred_region
      %s23 = ssub.s32 64, 64
      %24 = vsyncadd [#allocation6], %s23
      %s26 = sshll.u32 [#allocation5], 4
      %s27 = int_to_ptr.vmem [resolvable:$true] %s26
      %29 = dma.hbm_to_vmem [thread:$0]  %s1, 64, %s27, [#allocation6]
    $region9: #{tpu_custom_call.1} parent=1 // pred_fallthru
      _
    // Predicated region
    $region10: #{tpu_custom_call.1} parent=1 // pred_check
      _
    $region11: #{tpu_custom_call.1} parent=1 // pred_check_branch
      %31 = sbr.rel (0) target = $region13
    $region12: #{tpu_custom_call.1} parent=1 // pred_region
      %32 = dma.done [#allocation3], 256
    $region13: #{tpu_custom_call.1} parent=1 // pred_fallthru
      _
    // Predicated region
    $region14: #{tpu_custom_call.1} parent=1 // pred_check
      _
    $region15: #{tpu_custom_call.1} parent=1 // pred_check_branch
      %34 = sbr.rel (0) target = $region17
    $region16: #{tpu_custom_call.1} parent=1 // pred_region
      %35 = dma.done [#allocation6], 64
    $region17: #{tpu_custom_call.1} parent=1 // pred_fallthru
      _
    %v38 = vld [vmem:[#allocation2] sm:$0xff]
    %v39 = vld [vmem:[#allocation2 + $0x8] sm:$0xff]
    %v40 = vlaneseq
    %v41 = vand.u32 %v40, 127
    %v42 = vadd.s32 %v41, 128
    %v43 = vand.u32 %v41, 15
    %v44 = vand.u32 %v42, 15
    %45 = vrot.lane.b32.xlu0 %v38, 17
    %v46 = vpop.permute.xlu0 %45
    %47 = vrot.lane.b32.xlu0 %v39, 17
    %v48 = vpop.permute.xlu0 %47
    %vm49 = vcmp.lt.s32.totalorder %v41, 17
    %v50 = vsel %vm49, %v46, %v48
    %v51 = vsel %vm49, %v48, %v46
    %vm52 = vcmp.ge.s32.totalorder %v41, 16
    %vm53 = vcmp.ge.s32.totalorder %v42, 16
    %vm54 = vcmp.ge.s32.totalorder %v43, 1
    %vm55 = vcmp.ge.s32.totalorder %v44, 1
    %vm56 = vmand %vm52, %vm54
    %vm57 = vmand %vm53, %vm55
    %v58 = vsel %vm56, 1, 0
    %v59 = vsel %vm57, 1, 0
    %vm60 = vcmp.eq.s32.totalorder %v58, 1
    %vm61 = vcmp.eq.s32.totalorder %v59, 1
    %v62 = vsel %vm60, %v51, 0.0
    %v63 = vsel %vm61, %v50, 0.0
    %v64 = vpack.c.bf16 %v62, %v62
    %v65 = vpack.c.bf16 %v63, %v63
    %66 = vrot.lane.b32.xlu0 %v38, 16
    %v67 = vpop.permute.xlu0 %66
    %68 = vrot.lane.b32.xlu0 %v39, 16
    %v69 = vpop.permute.xlu0 %68
    %vm70 = vcmp.lt.s32.totalorder %v41, 16
    %v71 = vsel %vm70, %v67, %v69
    %v72 = vsel %vm70, %v69, %v67
    %v73 = vsel %vm52, 1, 0
    %v74 = vsel %vm53, 1, 0
    %vm75 = vcmp.eq.s32.totalorder %v73, 1
    %vm76 = vcmp.eq.s32.totalorder %v74, 1
    %v77 = vsel %vm75, %v72, 0.0
    %v78 = vsel %vm76, %v71, 0.0
    %v79 = vpack.c.bf16 %v77, %v77
    %v80 = vpack.c.bf16 %v78, %v78
    %81 = vrot.lane.b32.xlu0 %v38, 15
    %v82 = vpop.permute.xlu0 %81
    %83 = vrot.lane.b32.xlu0 %v39, 15
    %v84 = vpop.permute.xlu0 %83
    %vm85 = vcmp.lt.s32.totalorder %v41, 15
    %v86 = vsel %vm85, %v82, %v84
    %v87 = vsel %vm85, %v84, %v82
    %vm88 = vcmp.le.s32.totalorder %v43, 14
    %vm89 = vcmp.le.s32.totalorder %v44, 14
    %vm90 = vmand %vm52, %vm88
    %vm91 = vmand %vm53, %vm89
    %v92 = vsel %vm90, 1, 0
    %v93 = vsel %vm91, 1, 0
    %vm94 = vcmp.eq.s32.totalorder %v92, 1
    %vm95 = vcmp.eq.s32.totalorder %v93, 1
    %v96 = vsel %vm94, %v87, 0.0
    %v97 = vsel %vm95, %v86, 0.0
    %v98 = vpack.c.bf16 %v96, %v96
    %v99 = vpack.c.bf16 %v97, %v97
    %100 = vrot.lane.b32.xlu0 %v38, 1
    %v101 = vpop.permute.xlu0 %100
    %102 = vrot.lane.b32.xlu0 %v39, 1
    %v103 = vpop.permute.xlu0 %102
    %vm104 = vcmp.lt.s32.totalorder %v41, 1
    %v105 = vsel %vm104, %v101, %v103
    %v106 = vsel %vm104, %v103, %v101
    %v107 = vsel %vm54, 1, 0
    %v108 = vsel %vm55, 1, 0
    %vm109 = vcmp.eq.s32.totalorder %v107, 1
    %vm110 = vcmp.eq.s32.totalorder %v108, 1
    %v111 = vsel %vm109, %v106, 0.0
    %v112 = vsel %vm110, %v105, 0.0
    %v113 = vpack.c.bf16 %v111, %v111
    %v114 = vpack.c.bf16 %v112, %v112
    %v115 = vpack.c.bf16 %v38, %v38
    %v116 = vpack.c.bf16 %v39, %v39
    %117 = vrot.lane.b32.xlu0 %v38, 127
    %v118 = vpop.permute.xlu0 %117
    %119 = vrot.lane.b32.xlu0 %v39, 127
    %v120 = vpop.permute.xlu0 %119
    %vm121 = vcmp.lt.s32.totalorder %v41, 127
    %v122 = vsel %vm121, %v118, %v120
    %v123 = vsel %vm121, %v120, %v118
    %v124 = vsel %vm88, 1, 0
    %v125 = vsel %vm89, 1, 0
    %vm126 = vcmp.eq.s32.totalorder %v124, 1
    %vm127 = vcmp.eq.s32.totalorder %v125, 1
    %v128 = vsel %vm126, %v122, 0.0
    %v129 = vsel %vm127, %v123, 0.0
    %v130 = vpack.c.bf16 %v128, %v128
    %v131 = vpack.c.bf16 %v129, %v129
    %132 = vrot.lane.b32.xlu0 %v38, 113
    %v133 = vpop.permute.xlu0 %132
    %134 = vrot.lane.b32.xlu0 %v39, 113
    %v135 = vpop.permute.xlu0 %134
    %vm136 = vcmp.lt.s32.totalorder %v41, 113
    %v137 = vsel %vm136, %v133, %v135
    %v138 = vsel %vm136, %v135, %v133
    %vm139 = vcmp.lt.s32.totalorder %v41, 240
    %vm140 = vcmp.lt.s32.totalorder %v42, 240
    %vm141 = vmand %vm139, %vm54
    %vm142 = vmand %vm140, %vm55
    %v143 = vsel %vm141, 1, 0
    %v144 = vsel %vm142, 1, 0
    %vm145 = vcmp.eq.s32.totalorder %v143, 1
    %vm146 = vcmp.eq.s32.totalorder %v144, 1
    %v147 = vsel %vm145, %v137, 0.0
    %v148 = vsel %vm146, %v138, 0.0
    %v149 = vpack.c.bf16 %v147, %v147
    %v150 = vpack.c.bf16 %v148, %v148
    %151 = vrot.lane.b32.xlu0 %v38, 112
    %v152 = vpop.permute.xlu0 %151
    %153 = vrot.lane.b32.xlu0 %v39, 112
    %v154 = vpop.permute.xlu0 %153
    %vm155 = vcmp.lt.s32.totalorder %v41, 112
    %v156 = vsel %vm155, %v152, %v154
    %v157 = vsel %vm155, %v154, %v152
    %v158 = vsel %vm139, 1, 0
    %v159 = vsel %vm140, 1, 0
    %vm160 = vcmp.eq.s32.totalorder %v158, 1
    %vm161 = vcmp.eq.s32.totalorder %v159, 1
    %v162 = vsel %vm160, %v156, 0.0
    %v163 = vsel %vm161, %v157, 0.0
    %v164 = vpack.c.bf16 %v162, %v162
    %v165 = vpack.c.bf16 %v163, %v163
    %166 = vrot.lane.b32.xlu0 %v38, 111
    %v167 = vpop.permute.xlu0 %166
    %168 = vrot.lane.b32.xlu0 %v39, 111
    %v169 = vpop.permute.xlu0 %168
    %vm170 = vcmp.lt.s32.totalorder %v41, 111
    %v171 = vsel %vm170, %v167, %v169
    %v172 = vsel %vm170, %v169, %v167
    %vm173 = vmand %vm139, %vm88
    %vm174 = vmand %vm140, %vm89
    %v175 = vsel %vm173, 1, 0
    %v176 = vsel %vm174, 1, 0
    %vm177 = vcmp.eq.s32.totalorder %v175, 1
    %vm178 = vcmp.eq.s32.totalorder %v176, 1
    %v179 = vsel %vm177, %v171, 0.0
    %v180 = vsel %vm178, %v172, 0.0
    %v181 = vpack.c.bf16 %v179, %v179
    %v182 = vpack.c.bf16 %v180, %v180
    %v185 = vrot.slane %v79, 4
    %v186 = vrot.slane %v80, 4
    %v189 = vrot.slane %v113, 4
    %v190 = vrot.slane %v114, 4
    %v193 = vrot.slane %v130, 4
    %v194 = vrot.slane %v131, 4
    %v197 = vrot.slane %v164, 4
    %v198 = vrot.slane %v165, 4
    %vm199 = vcmask 1043456
    %v202 = vsel %vm199, %v64, %v185
    %v206 = vsel %vm199, %v65, %v186
    %v210 = vsel %vm199, %v98, %v189
    %v214 = vsel %vm199, %v99, %v190
    %v218 = vsel %vm199, %v115, %v193
    %v222 = vsel %vm199, %v116, %v194
    %v226 = vsel %vm199, %v149, %v197
    %v230 = vsel %vm199, %v150, %v198
    %v234 = vsel %vm199, %v181, 1065369472
    %v236 = vsel %vm199, %v182, 1065369472
    %v237 = vld [vmem:[#allocation5] sm:$0xf]
    %vm238 = vcmask 596992
    %v240 = vsel %vm238, %v237, 0
    %vm242 = vcmask 1044480
    %v243 = vsel %vm199, 4294967295, 65535
    %v244 = vsel %vm242, %v243, 0
    %v245 = vand.u32 %v234, %v244
    %v247 = vand.u32 %v236, %v244
    %249 = vmatprep.subr.bf16.mxu0 %v206
    %250 = vmatpush1.bf16.msra.mxu0 %v202
    %251 = vmatprep.subr.bf16.mxu0 %v214
    %252 = vmatpush1.bf16.msra.mxu0 %v210
    %253 = vmatprep.subr.bf16.mxu0 %v222
    %254 = vmatpush1.bf16.msra.mxu0 %v218
    %255 = vmatprep.subr.bf16.mxu0 %v230
    %256 = vmatpush1.bf16.msra.mxu0 %v226
    %257 = vmatprep.subr.bf16.mxu0 %v247
    %258 = vmatpush1.bf16.msra.mxu0 %v245
    %259 = vmatprep.subr.bf16.mxu0 0
    %260 = vmatpush1.bf16.msra.mxu0 0
    %261 = vmatprep.subr.bf16.mxu0 0
    %262 = vmatpush1.bf16.msra.mxu0 0
    %263 = vmatprep.subr.bf16.mxu0 0
    %264 = vmatpush1.bf16.msra.mxu0 0
    %265 = vmatprep.subr.bf16.mxu0 0
    %266 = vmatpush1.bf16.msra.mxu0 0
    %267 = vmatprep.subr.bf16.mxu0 0
    %268 = vmatpush1.bf16.msra.mxu0 0
    %269 = vmatprep.subr.bf16.mxu0 0
    %270 = vmatpush1.bf16.msra.mxu0 0
    %271 = vmatprep.subr.bf16.mxu0 0
    %272 = vmatpush1.bf16.msra.mxu0 0
    %273 = vmatprep.subr.bf16.mxu0 0
    %274 = vmatpush1.bf16.msra.mxu0 0
    %275 = vmatprep.subr.bf16.mxu0 0
    %276 = vmatpush1.bf16.msra.mxu0 0
    %277 = vmatprep.subr.bf16.mxu0 0
    %278 = vmatpush1.bf16.msra.mxu0 0
    %279 = vmatprep.subr.bf16.mxu0 0
    %280 = vmatpush1.bf16.msra.mxu0 0
    %281 = vmatprep.mubr.bf16.mxu0 0
    %282 = vmatmul.mubr.bf16.gmra.mrb[0].mxu0 %v240
    %v283 = vpop.f32.mrb[0].mxu0
    %v284 = vadd.f32 0.0, %v283
    %v285 = vpop.f32.mrb[0].mxu0
    %v286 = vadd.f32 0.0, %v285
    %v287 = vpop.f32.mrb[0].mxu0
    %v288 = vpop.f32.mrb[0].mxu0
    %289 = vdwg.mxu0
    %v290 = vmax.f32 %v284, 0.0
    %v291 = vmax.f32 %v286, 0.0
    %v294 = vrot.slane %v290, 4
    %v295 = vrot.slane %v291, 4
    %v300 = vrot.slane %v38, 4
    %v301 = vrot.slane %v39, 4
    %v304 = vsel %vm199, %v38, %v294
    %v305 = vsel %vm199, %v39, %v295
    %v306 = vsel %vm199, %v300, %v290
    %v307 = vsel %vm199, %v301, %v291
    %308 = vst [vmem:[#allocation7] sm:$0xff] %v304
    %309 = vst [vmem:[#allocation7 + $0x8] sm:$0xff] %v305
    %310 = vst [vmem:[#allocation7 + $0x10] sm:$0xff] %v306
    %311 = vst [vmem:[#allocation7 + $0x18] sm:$0xff] %v307
    // Predicated region
    $region18: #{tpu_custom_call.1} parent=1 // pred_check
      _
    $region19: #{tpu_custom_call.1} parent=1 // pred_check_branch
      %313 = sbr.rel (0) target = $region21
    $region20: #{tpu_custom_call.1} parent=1 // pred_region
      %s315 = ssub.s32 512, 512
      %316 = vsyncadd [#allocation4], %s315
      %s317 = sshll.u32 [#allocation7], 4
      %s318 = int_to_ptr.vmem [resolvable:$true] %s317
      %323 = dma.vmem_to_hbm [thread:$0]  %s318, 512, %s2, [#allocation4], 256, 256, 16
    $region21: #{tpu_custom_call.1} parent=1 // pred_fallthru
      _
    // Predicated region
    $region22: #{tpu_custom_call.1} parent=1 // pred_check
      _
    $region23: #{tpu_custom_call.1} parent=1 // pred_check_branch
      %325 = sbr.rel (0) target = $region25
    $region24: #{tpu_custom_call.1} parent=1 // pred_region
      %326 = dma.done [#allocation4], 512
    $region25: #{tpu_custom_call.1} parent=1 // pred_fallthru
      _
    %327 = vsyncpa [#allocation3], 1
    %328 = vsyncpa [#allocation6], 1
    %329 = vsyncpa [#allocation4], 1

</llo_original>
